<compile_context>
chip_gen: v7x
topology: tpu7x:2x2x1
jax: 0.10.0
libtpu: 0.0.40
codegen_flags: <defaults>
</compile_context>

<pallas_src>
import functools

import jax
import jax.numpy as jnp
from jax import lax
from jax.experimental import pallas as pl
from jax.experimental.pallas import tpu as pltpu

LANES = 128
TILE_ROWS = 4096   # 4096 x 128 f32 = 2 MiB per input block
NSPLIT = 2         # number of partial sums (megacore split on v7x)


# ---------------------------------------------------------------------------
# Small path: whole (M, 128) slab in a single VMEM block, single reduce.
# ---------------------------------------------------------------------------
def _l2_small_kernel(x_ref, y_ref, o_ref):
    d = x_ref[...].astype(jnp.float32) - y_ref[...].astype(jnp.float32)
    o_ref[0, 0] = jnp.sum(d * d)


# ---------------------------------------------------------------------------
# Grid path: (NSPLIT, tiles_per_split) grid, full-block VMEM accumulator.
# ---------------------------------------------------------------------------
def _l2_grid_kernel(x_ref, y_ref, o_ref, acc_ref, *,
                    total_rows, tiles_per_split, needs_mask):
    j = pl.program_id(1)

    @pl.when(j == 0)
    def _():
        acc_ref[...] = jnp.zeros_like(acc_ref)

    d = x_ref[...].astype(jnp.float32) - y_ref[...].astype(jnp.float32)
    dsq = d * d

    if needs_mask:
        # Mask rows past the valid extent. Handles both the ragged last real
        # tile (unspecified padding data) and fully out-of-range (clamped,
        # duplicated) logical tiles.  jnp.where selects, so NaN/Inf garbage in
        # masked rows never propagates into the accumulator.
        c = pl.program_id(0)
        t = c * tiles_per_split + j                       # logical tile index
        row_ids = t * TILE_ROWS + lax.broadcasted_iota(jnp.int32, dsq.shape, 0)
        dsq = jnp.where(row_ids < total_rows, dsq, 0.0)

    # Pure VPU adds on the hot path; no per-step XLU reduce / SMEM RMW.
    acc_ref[...] += dsq

    @pl.when(j == pl.num_programs(1) - 1)
    def _():
        o_ref[0, 0] = jnp.sum(acc_ref[...])


def l2loss(x, y):
    """mean((x - y)**2), computed in a Pallas TPU kernel. Returns an f32 scalar."""
    assert x.shape == y.shape, "x and y must have the same shape"
    n = x.size
    inv_count = jnp.float32(1.0 / float(n))

    xf = x.reshape(-1)
    yf = y.reshape(-1)

    # Pad only the tail (in the ORIGINAL dtype) so the flat length is a multiple
    # of 128 lanes. Padding BOTH operands with zeros adds exactly 0 to the sum.
    rem = n % LANES
    if rem:
        pad = LANES - rem
        xf = jnp.pad(xf, (0, pad))
        yf = jnp.pad(yf, (0, pad))
    m_rows = xf.size // LANES
    x2d = xf.reshape(m_rows, LANES)
    y2d = yf.reshape(m_rows, LANES)

    if m_rows <= TILE_ROWS:
        # Single-block path for small inputs: no tiling, one reduce.
        out = pl.pallas_call(
            _l2_small_kernel,
            out_shape=jax.ShapeDtypeStruct((1, 1), jnp.float32),
            grid_spec=pltpu.PrefetchScalarGridSpec(
                num_scalar_prefetch=0,
                grid=(1,),
                in_specs=[
                    pl.BlockSpec((m_rows, LANES), lambda i: (0, 0)),
                    pl.BlockSpec((m_rows, LANES), lambda i: (0, 0)),
                ],
                out_specs=pl.BlockSpec((1, 1), lambda i: (0, 0),
                                       memory_space=pltpu.SMEM),
            ),
        )(x2d, y2d)
        return out[0, 0] * inv_count

    # Tiled reduction path for large inputs.
    nblocks = pl.cdiv(m_rows, TILE_ROWS)
    tps = pl.cdiv(nblocks, NSPLIT)                 # tiles per parallel chunk
    last_block = nblocks - 1
    needs_mask = (tps * NSPLIT * TILE_ROWS) != m_rows

    def in_map(c, j):
        # Clamp so padded logical tiles re-read the last real block (their
        # contribution is masked to zero in-kernel) -- never out-of-bounds.
        return (jnp.minimum(c * tps + j, last_block), 0)

    kernel = functools.partial(
        _l2_grid_kernel,
        total_rows=m_rows,
        tiles_per_split=tps,
        needs_mask=needs_mask,
    )

    partial_sums = pl.pallas_call(
        kernel,
        out_shape=jax.ShapeDtypeStruct((NSPLIT, 1), jnp.float32),
        grid_spec=pltpu.PrefetchScalarGridSpec(
            num_scalar_prefetch=0,
            grid=(NSPLIT, tps),
            in_specs=[
                pl.BlockSpec((TILE_ROWS, LANES), in_map),
                pl.BlockSpec((TILE_ROWS, LANES), in_map),
            ],
            out_specs=pl.BlockSpec((1, 1), lambda c, j: (c, 0),
                                   memory_space=pltpu.SMEM),
            scratch_shapes=[pltpu.VMEM((TILE_ROWS, LANES), jnp.float32)],
        ),
        compiler_params=pltpu.CompilerParams(
            dimension_semantics=("parallel", "arbitrary"),
            vmem_limit_bytes=32 * 1024 * 1024,
        ),
    )(x2d, y2d)

    # Combine the per-chunk partial sums and apply the mean scaling.
    return jnp.sum(partial_sums) * inv_count


if __name__ == "__main__":
    key = jax.random.PRNGKey(0)

    def check(shape, k):
        kx, ky = jax.random.split(k)
        x = jax.random.normal(kx, shape, dtype=jnp.float32)
        y = jax.random.normal(ky, shape, dtype=jnp.float32)
        loss = jax.block_until_ready(l2loss(x, y))
        ref = jnp.mean((x - y) ** 2)
        assert jnp.allclose(loss, ref, rtol=1e-5, atol=1e-6), (shape, loss, ref)

    k0, k1, k2, k3 = jax.random.split(key, 4)
    # Spec-consistent NCHW shape: small single-block path.
    check((2, 4, 16, 16), k0)
    # Ragged element count (n % 128 != 0): exercises the tail-pad path.
    check((3, 5, 17, 19), k1)
    # Small but n % 128 == 0 with many rows: single-block path, m_rows = 1040.
    check((4, 4, 64, 130), k2)
    # > one 4096x128 tile (5120 rows): exercises the tiled grid path, the 2-way
    # partial-sum split, and in-kernel masking of the partial last block.
    check((16, 8, 64, 80), k3)

    print("KERNEL_OK")
</pallas_src>

<mosaic_0001>
module attributes {stable_mosaic.version = 11 : i64} {
  func.func @_l2_small_kernel(%arg0: i32, %arg1: memref<16x128xf32, #tpu.memory_space<vmem>>, %arg2: memref<16x128xf32, #tpu.memory_space<vmem>>, %arg3: memref<1x1xf32, #tpu.memory_space<smem>>) attributes {dimension_semantics = [#tpu.dimension_semantics<arbitrary>], iteration_bounds = array<i64: 1>, scalar_prefetch = 0 : i64, scratch_operands = 0 : i64, tpu.core_type = #tpu.core_type<tc>, window_params = [{pipeline_mode = #tpu.pipeline_mode<synchronous>, transform_indices = @transform_0, window_bounds = array<i64: 16, 128>}, {pipeline_mode = #tpu.pipeline_mode<synchronous>, transform_indices = @transform_1, window_bounds = array<i64: 16, 128>}, {transform_indices = @transform_2, window_bounds = array<i64: 1, 1>}]} {
    %c0 = arith.constant 0 : index
    %c0_0 = arith.constant 0 : index
    %0 = vector.load %arg1[%c0, %c0_0] : memref<16x128xf32, #tpu.memory_space<vmem>>, vector<16x128xf32>
    %c0_1 = arith.constant 0 : index
    %c0_2 = arith.constant 0 : index
    %1 = vector.load %arg2[%c0_1, %c0_2] : memref<16x128xf32, #tpu.memory_space<vmem>>, vector<16x128xf32>
    %2 = arith.subf %0, %1 : vector<16x128xf32>
    %3 = arith.mulf %2, %2 : vector<16x128xf32>
    %4 = vector.shape_cast %3 : vector<16x128xf32> to vector<1x16x128xf32>
    %cst = arith.constant dense<0.000000e+00> : vector<1xf32>
    %5 = vector.multi_reduction <add>, %4, %cst [1, 2] : vector<1x16x128xf32> to vector<1xf32>
    %6 = vector.shape_cast %5 : vector<1xf32> to vector<1x1x1xf32>
    %7 = vector.extract %6[0, 0, 0] : f32 from vector<1x1x1xf32>
    %c0_3 = arith.constant 0 : index
    %c0_4 = arith.constant 0 : index
    %8 = memref.load %arg3[%c0_3, %c0_4] : memref<1x1xf32, #tpu.memory_space<smem>>
    memref.store %7, %arg3[%c0_3, %c0_4] : memref<1x1xf32, #tpu.memory_space<smem>>
    return
  }
  func.func @transform_0(%arg0: i32) -> (i32, i32) {
    %c0_i32 = arith.constant 0 : i32
    %c0_i32_0 = arith.constant 0 : i32
    %c0_i32_1 = arith.constant 0 : i32
    return %c0_i32, %c0_i32_0 : i32, i32
  }
  func.func @transform_1(%arg0: i32) -> (i32, i32) {
    %c0_i32 = arith.constant 0 : i32
    %c0_i32_0 = arith.constant 0 : i32
    %c0_i32_1 = arith.constant 0 : i32
    return %c0_i32, %c0_i32_0 : i32, i32
  }
  func.func @transform_2(%arg0: i32) -> (i32, i32) {
    %c0_i32 = arith.constant 0 : i32
    %c0_i32_0 = arith.constant 0 : i32
    %c0_i32_1 = arith.constant 0 : i32
    return %c0_i32, %c0_i32_0 : i32, i32
  }
}

</mosaic_0001>

<llo_original>
// kernel: tpu_custom_call.1
$region0: #{tpu_custom_call.1}
  #allocation0 [shape = 'u32[]', space=smem, size = 0x4, offset = 0x4, fixed_abs, tag = 'smem constant byte address 0x4 - core index']
  #allocation1 [shape = 'u32[144,128]{1,0:T(1,128)}', space=vmem, size = 0x12000, scoped, tag = 'internal scratch']
  %s0 = inlined_call_operand.hbm [shape: f32[16,128], index: 0, kind: input, shape index: {}]
  %s1 = inlined_call_operand.hbm [shape: f32[16,128], index: 1, kind: input, shape index: {}]
  %s2 = inlined_call_operand.hbm [shape: f32[1,1], index: 2, kind: output, shape index: {}]
  %s3 = sld [smem:[#allocation0]]
  $region26: #{tpu_custom_call.1} parent=0
    _
  %s5 = ssub.s32 1, %s3
  %s6 = scalar_select 0, %s5, %s3
  $region1: #{tpu_custom_call.1} parent=0
    #allocation2 [shape = 'u8[8192]{0}', space=vmem, size = 0x2000, scoped, tag = 'input window, operand 0, single buffered']
    #allocation3 [shape = 's32[1]{0}', space=sflag, size = 0x4, scoped, tag = 'scoped memory for tpu_custom_call.1']
    #allocation4 [shape = 's32[1]{0}', space=sflag, size = 0x4, scoped, tag = 'scoped memory for tpu_custom_call.1']
    #allocation5 [shape = 'u8[8192]{0}', space=vmem, size = 0x2000, scoped, tag = 'input window, operand 1, single buffered']
    #allocation6 [shape = 's32[1]{0}', space=sflag, size = 0x4, scoped, tag = 'scoped memory for tpu_custom_call.1']
    #allocation7 [shape = 'u8[512]{0}', space=smem, size = 0x200, scoped, tag = 'output window, operand 0, single buffered']
    %7 = vsyncpa [#allocation3], 0
    %8 = vsyncpa [#allocation6], 0
    %9 = vsyncpa [#allocation4], 0
    // Predicated region
    $region2: #{tpu_custom_call.1} parent=1 // pred_check
      _
    $region3: #{tpu_custom_call.1} parent=1 // pred_check_branch
      %11 = sbr.rel (0) target = $region5
    $region4: #{tpu_custom_call.1} parent=1 // pred_region
      %s13 = ssub.s32 256, 256
      %14 = vsyncadd [#allocation3], %s13
      %s15 = sshll.u32 [#allocation2], 4
      %s16 = int_to_ptr.vmem [resolvable:$true] %s15
      %21 = dma.hbm_to_vmem [thread:$0]  %s0, 256, %s16, [#allocation3], 128, 128, 8
    $region5: #{tpu_custom_call.1} parent=1 // pred_fallthru
      _
    // Predicated region
    $region6: #{tpu_custom_call.1} parent=1 // pred_check
      _
    $region7: #{tpu_custom_call.1} parent=1 // pred_check_branch
      %23 = sbr.rel (0) target = $region9
    $region8: #{tpu_custom_call.1} parent=1 // pred_region
      %s25 = ssub.s32 256, 256
      %26 = vsyncadd [#allocation6], %s25
      %s27 = sshll.u32 [#allocation5], 4
      %s28 = int_to_ptr.vmem [resolvable:$true] %s27
      %33 = dma.hbm_to_vmem [thread:$0]  %s1, 256, %s28, [#allocation6], 128, 128, 8
    $region9: #{tpu_custom_call.1} parent=1 // pred_fallthru
      _
    // Predicated region
    $region10: #{tpu_custom_call.1} parent=1 // pred_check
      _
    $region11: #{tpu_custom_call.1} parent=1 // pred_check_branch
      %35 = sbr.rel (0) target = $region13
    $region12: #{tpu_custom_call.1} parent=1 // pred_region
      %36 = dma.done [#allocation3], 256
    $region13: #{tpu_custom_call.1} parent=1 // pred_fallthru
      _
    // Predicated region
    $region14: #{tpu_custom_call.1} parent=1 // pred_check
      _
    $region15: #{tpu_custom_call.1} parent=1 // pred_check_branch
      %38 = sbr.rel (0) target = $region17
    $region16: #{tpu_custom_call.1} parent=1 // pred_region
      %39 = dma.done [#allocation6], 256
    $region17: #{tpu_custom_call.1} parent=1 // pred_fallthru
      _
    %v40 = vld [vmem:[#allocation2] sm:$0xff]
    %v41 = vld [vmem:[#allocation2 + $0x8] sm:$0xff]
    %v42 = vld [vmem:[#allocation5] sm:$0xff]
    %v43 = vld [vmem:[#allocation5 + $0x8] sm:$0xff]
    %v44 = vsub.f32 %v40, %v42
    %v45 = vsub.f32 %v41, %v43
    %v46 = vmul.f32 %v44, %v44
    %v47 = vmul.f32 %v45, %v45
    %v48 = vadd.f32 %v46, %v47
    %49 = vadd.xlane.f32.xlu0 %v48
    %v50 = vpop.xlane.xlu0 %49
    %v51 = vrot.slane %v50, 4
    %v52 = vadd.f32 %v50, %v51
    %v53 = vrot.slane %v52, 2
    %v54 = vadd.f32 %v52, %v53
    %v55 = vrot.slane %v54, 1
    %v56 = vadd.f32 %v54, %v55
    %s57 = vtos %v56
    %s58 = scalar_lea.smem [#allocation7], 0
    %59 = sst [smem:[%s58]] %s57
    // Predicated region
    $region18: #{tpu_custom_call.1} parent=1 // pred_check
      _
    $region19: #{tpu_custom_call.1} parent=1 // pred_check_branch
      %61 = sbr.rel (0) target = $region21
    $region20: #{tpu_custom_call.1} parent=1 // pred_region
      %s63 = ssub.s32 16, 16
      %64 = vsyncadd [#allocation4], %s63
      %67 = dma.smem_to_hbm [#allocation7], 16, %s2, [#allocation4]
    $region21: #{tpu_custom_call.1} parent=1 // pred_fallthru
      _
    // Predicated region
    $region22: #{tpu_custom_call.1} parent=1 // pred_check
      _
    $region23: #{tpu_custom_call.1} parent=1 // pred_check_branch
      %69 = sbr.rel (0) target = $region25
    $region24: #{tpu_custom_call.1} parent=1 // pred_region
      %70 = dma.done [#allocation4], 16
    $region25: #{tpu_custom_call.1} parent=1 // pred_fallthru
      _
    %71 = sfence
    %72 = vsyncpa [#allocation3], 1
    %73 = vsyncpa [#allocation6], 1
    %74 = vsyncpa [#allocation4], 1

</llo_original>
